<compile_context>
chip_gen: v5e
topology: v5e:2x2
jax: 0.10.0
libtpu: 0.0.40
codegen_flags: <defaults>
</compile_context>

<pallas_src>
import math
from functools import partial

import jax
import jax.numpy as jnp
from jax import lax
from jax.experimental import pallas as pl
from jax.experimental.pallas import tpu as pltpu


# ----------------------------------------------------------------------------
# Hardware-aware planning helpers
# ----------------------------------------------------------------------------
def _round_up(x, m):
    return (x + m - 1) // m * m


def _cdiv(a, b):
    return -(-a // b)


def _sublane(itemsize):
    # dtype-aware sublane alignment for the streamed encoder blocks
    return {4: 8, 2: 16, 1: 32}.get(itemsize, 8)


def _vmem_capacity_bytes():
    try:
        cap = int(pltpu.get_tpu_info().vmem_capacity_bytes)
        if cap > 0:
            return cap
    except Exception:
        pass
    return 64 * 1024 * 1024          # conservative default (v7x per-TC VMEM)


_BUFFERED_WEIGHTS_OK = None


def _single_buffer_weights_supported():
    """Probe once whether pipeline_mode=pl.Buffered(1) lowers on this stack."""
    global _BUFFERED_WEIGHTS_OK
    if _BUFFERED_WEIGHTS_OK is not None:
        return _BUFFERED_WEIGHTS_OK

    def _probe(x_ref, o_ref):
        o_ref[...] = x_ref[...] + 1.0

    try:
        out = pl.pallas_call(
            _probe,
            out_shape=jax.ShapeDtypeStruct((8, 128), jnp.float32),
            grid=(2,),
            in_specs=[pl.BlockSpec((8, 128), lambda i: (0, 0),
                                   pipeline_mode=pl.Buffered(1))],
            out_specs=pl.BlockSpec((8, 128), lambda i: (0, 0)),
        )(jnp.zeros((8, 128), jnp.float32))
        jax.block_until_ready(out)
        _BUFFERED_WEIGHTS_OK = True
    except Exception:
        _BUFFERED_WEIGHTS_OK = False
    return _BUFFERED_WEIGHTS_OK


def _const_spec(shape, single_buffer):
    """Resident (constant index map) weight/bias BlockSpec."""
    idx = lambda b, s: (0,) * len(shape)
    if single_buffer:
        return pl.BlockSpec(shape, idx, pipeline_mode=pl.Buffered(1))
    return pl.BlockSpec(shape, idx)


def _plan(B, S, D, itemsize, n_streams, weight_bytes, max_enc_tile_bytes=None):
    """Choose (TB, TS, acc_sub, vmem_limit).

    Budget: n_streams * 2(buffers) * enc_tile + 2 * weights + accumulators +
    reserve must fit the per-core VMEM of the current TPU generation."""
    sub = _sublane(itemsize)
    cap = _vmem_capacity_bytes()
    vmem_limit = max(24 << 20, min(cap * 3 // 4, cap - (8 << 20)))
    per_tile_cap = (12 << 20) if cap >= (100 << 20) else (5 << 20)
    if max_enc_tile_bytes is not None:
        per_tile_cap = min(per_tile_cap, int(max_enc_tile_bytes))

    # reserve for accumulators / epilogue outputs / Mosaic internal scratch;
    # weights are budgeted at 2x in case single-buffering is unavailable.
    enc_budget = max(1 << 20, vmem_limit - 2 * weight_bytes - (8 << 20))
    tile_bytes = min(per_tile_cap, max(256 << 10, enc_budget // (2 * n_streams)))

    row_bytes = D * itemsize
    if B <= 8:
        TB = B                                   # single exact batch tile
    else:
        TB = min(_round_up(B, 8), 128)
        # megacore: prefer >= 2 blocks along the parallel batch axis (v7x: 2 TCs)
        while TB > 8 and _cdiv(B, TB) < 2:
            TB = max(8, _round_up(TB // 2, 8))
        # shrink TB (not just TS) when the per-seq-row footprint is large
        while TB > 8 and TB * row_bytes * sub > tile_bytes:
            TB = max(8, _round_up(TB // 2, 8))

    ts_cap = max(sub, (tile_bytes // max(1, TB * row_bytes)) // sub * sub)
    TS = S if S <= ts_cap else ts_cap

    # [TB, 8, D] f32 partial accumulator keeps the hot loop pure VPU adds;
    # fall back to a [TB, 1, D] accumulator when it would cost too much VMEM.
    acc_sub = 8 if (TS % 8 == 0 and n_streams * TB * 8 * D * 4 <= (4 << 20)) else 1
    return TB, TS, acc_sub, vmem_limit


# ----------------------------------------------------------------------------
# Kernels
# ----------------------------------------------------------------------------
def _relu(x):
    return jnp.maximum(x, 0.0)


def _partial_seq_sum(enc_ref, s, seq_len, acc_sub):
    """f32 partial sum of a [TB, TS, D] tile over seq, shaped [TB, acc_sub, D].

    Masks the ragged seq tail when TS does not divide seq_len (OOB rows of the
    edge block hold unspecified data)."""
    tb, ts, d = enc_ref.shape
    x = enc_ref[...].astype(jnp.float32)
    if seq_len % ts != 0:                      # static check; no cost otherwise
        rem = seq_len - s * ts                 # >= ts on all but the last tile
        seq_idx = lax.broadcasted_iota(jnp.int32, (1, ts, 1), 1)
        x = jnp.where(seq_idx < rem, x, 0.0)
    if acc_sub > 1:
        return jnp.sum(x.reshape(tb, ts // acc_sub, acc_sub, d), axis=1)
    return jnp.sum(x, axis=1, keepdims=True)


def _clip_contrastive_kernel(
    enc1_ref, enc2_ref,                  # [TB, TS, D] streamed encoder tiles
    w1_ref, b1_ref,                      # to_text_latent1  ([D, D], [1, D])
    w2_ref, b2_ref,                      # to_text_latent2  ([D, D], [1, D])
    wd_ref, bd_ref,                      # dense            ([D, 2], [1, 2])
    out1_ref, out2_ref,                  # [TB, 2] each
    acc1_ref, acc2_ref,                  # scratch [TB, acc_sub, D] f32
    *, seq_len, acc_sub,
):
    s = pl.program_id(1)

    @pl.when(s == 0)
    def _():
        acc1_ref[...] = jnp.zeros_like(acc1_ref)
        acc2_ref[...] = jnp.zeros_like(acc2_ref)

    # Hot loop: pure vector loads + adds (HBM-bound).
    acc1_ref[...] += _partial_seq_sum(enc1_ref, s, seq_len, acc_sub)
    acc2_ref[...] += _partial_seq_sum(enc2_ref, s, seq_len, acc_sub)

    @pl.when(s == pl.num_programs(1) - 1)
    def _():
        inv = jnp.float32(1.0 / seq_len)

        def head(acc):
            cls = jnp.sum(acc, axis=1) * inv                         # [TB, D]
            h = _relu(jnp.dot(cls, w1_ref[...],
                              preferred_element_type=jnp.float32) + b1_ref[...])
            h = _relu(jnp.dot(h, w2_ref[...],
                              preferred_element_type=jnp.float32) + b2_ref[...])
            return jnp.dot(h, wd_ref[...],
                           preferred_element_type=jnp.float32) + bd_ref[...]

        out1_ref[...] = head(acc1_ref[...])
        out2_ref[...] = head(acc2_ref[...])


def _clip_classifier_kernel(
    enc_ref,                             # [TB, TS, D]
    w1_ref, b1_ref, w2_ref, b2_ref,      # to_text_latent1 / 2
    wf1_ref, bf1_ref, wf2_ref, bf2_ref,  # fc1 / fc2
    wf3_ref, bf3_ref,                    # fc3 ([2D, C], [1, C])
    logits_ref, feat_ref,                # [TB, C], [TB, 2D]
    acc_ref,                             # scratch [TB, acc_sub, D] f32
    *, seq_len, acc_sub,
):
    s = pl.program_id(1)

    @pl.when(s == 0)
    def _():
        acc_ref[...] = jnp.zeros_like(acc_ref)

    acc_ref[...] += _partial_seq_sum(enc_ref, s, seq_len, acc_sub)

    @pl.when(s == pl.num_programs(1) - 1)
    def _():
        cls = jnp.sum(acc_ref[...], axis=1) * jnp.float32(1.0 / seq_len)
        x1 = _relu(jnp.dot(cls, w1_ref[...],
                           preferred_element_type=jnp.float32) + b1_ref[...])
        x1 = _relu(jnp.dot(x1, w2_ref[...],
                           preferred_element_type=jnp.float32) + b2_ref[...])
        x2 = _relu(jnp.dot(cls, wf1_ref[...],
                           preferred_element_type=jnp.float32) + bf1_ref[...])
        x2 = _relu(jnp.dot(x2, wf2_ref[...],
                           preferred_element_type=jnp.float32) + bf2_ref[...])
        feat = jnp.concatenate([x1, x2], axis=-1)                    # [TB, 2D]
        feat_ref[...] = feat
        logits_ref[...] = jnp.dot(feat, wf3_ref[...],
                                  preferred_element_type=jnp.float32) + bf3_ref[...]


# ----------------------------------------------------------------------------
# Parameter init (deterministic, matches nn.Linear default: U(-1/sqrt(in), +))
# ----------------------------------------------------------------------------
def _linear_params(key, d_in, d_out):
    kw, kb = jax.random.split(key)
    bound = 1.0 / math.sqrt(d_in)
    w = jax.random.uniform(kw, (d_in, d_out), jnp.float32, -bound, bound)
    b = jax.random.uniform(kb, (1, d_out), jnp.float32, -bound, bound)
    return w, b


def init_clip_params(key, dim_text, num_classes=2):
    keys = jax.random.split(key, 6)
    return {
        "to_text_latent1": _linear_params(keys[0], dim_text, dim_text),
        "to_text_latent2": _linear_params(keys[1], dim_text, dim_text),
        "dense": _linear_params(keys[2], dim_text, 2),
        "fc1": _linear_params(keys[3], dim_text, dim_text),
        "fc2": _linear_params(keys[4], dim_text, dim_text),
        "fc3": _linear_params(keys[5], 2 * dim_text, num_classes),
    }


# ----------------------------------------------------------------------------
# Wrappers
# ----------------------------------------------------------------------------
def clip_forward(params, enc_text1, enc_text2, *, max_enc_tile_bytes=None):
    """training_classifier=False path: (dense(CLS1), dense(CLS2)), each [B, 2]."""
    assert enc_text1.shape == enc_text2.shape, "both encoder streams must be [B, S, D]"
    B, S, D = enc_text1.shape

    w1, b1 = params["to_text_latent1"]
    w2, b2 = params["to_text_latent2"]
    wd, bd = params["dense"]
    weight_bytes = sum(int(a.size) * 4 for a in (w1, b1, w2, b2, wd, bd))

    TB, TS, acc_sub, vmem_limit = _plan(
        B, S, D, enc_text1.dtype.itemsize, n_streams=2,
        weight_bytes=weight_bytes, max_enc_tile_bytes=max_enc_tile_bytes)
    n_bt, n_st = _cdiv(B, TB), _cdiv(S, TS)
    Bp = n_bt * TB
    C = wd.shape[1]

    enc_spec = pl.BlockSpec((TB, TS, D), lambda b, s: (b, s, 0))
    out_spec = pl.BlockSpec((TB, C), lambda b, s: (b, 0))
    sbw = _single_buffer_weights_supported()

    out1, out2 = pl.pallas_call(
        partial(_clip_contrastive_kernel, seq_len=S, acc_sub=acc_sub),
        out_shape=(jax.ShapeDtypeStruct((Bp, C), jnp.float32),
                   jax.ShapeDtypeStruct((Bp, C), jnp.float32)),
        grid=(n_bt, n_st),
        in_specs=[
            enc_spec, enc_spec,
            _const_spec(w1.shape, sbw), _const_spec(b1.shape, sbw),
            _const_spec(w2.shape, sbw), _const_spec(b2.shape, sbw),
            _const_spec(wd.shape, sbw), _const_spec(bd.shape, sbw),
        ],
        out_specs=(out_spec, out_spec),
        scratch_shapes=[pltpu.VMEM((TB, acc_sub, D), jnp.float32),
                        pltpu.VMEM((TB, acc_sub, D), jnp.float32)],
        compiler_params=pltpu.CompilerParams(
            dimension_semantics=("parallel", "arbitrary"),
            vmem_limit_bytes=int(vmem_limit)),
    )(enc_text1, enc_text2, w1, b1, w2, b2, wd, bd)

    if Bp != B:
        out1, out2 = out1[:B], out2[:B]
    return out1, out2


def clip_forward_classifier(params, enc_text1, *, max_enc_tile_bytes=None):
    """training_classifier=True path: returns (fc3([x1, x2]), [x1, x2])."""
    B, S, D = enc_text1.shape

    w1, b1 = params["to_text_latent1"]
    w2, b2 = params["to_text_latent2"]
    wf1, bf1 = params["fc1"]
    wf2, bf2 = params["fc2"]
    wf3, bf3 = params["fc3"]
    weights = (w1, b1, w2, b2, wf1, bf1, wf2, bf2, wf3, bf3)
    weight_bytes = sum(int(a.size) * 4 for a in weights)

    TB, TS, acc_sub, vmem_limit = _plan(
        B, S, D, enc_text1.dtype.itemsize, n_streams=1,
        weight_bytes=weight_bytes, max_enc_tile_bytes=max_enc_tile_bytes)
    n_bt, n_st = _cdiv(B, TB), _cdiv(S, TS)
    Bp = n_bt * TB
    C = wf3.shape[1]

    enc_spec = pl.BlockSpec((TB, TS, D), lambda b, s: (b, s, 0))
    sbw = _single_buffer_weights_supported()

    logits, feat = pl.pallas_call(
        partial(_clip_classifier_kernel, seq_len=S, acc_sub=acc_sub),
        out_shape=(jax.ShapeDtypeStruct((Bp, C), jnp.float32),
                   jax.ShapeDtypeStruct((Bp, 2 * D), jnp.float32)),
        grid=(n_bt, n_st),
        in_specs=[enc_spec] + [_const_spec(a.shape, sbw) for a in weights],
        out_specs=(pl.BlockSpec((TB, C), lambda b, s: (b, 0)),
                   pl.BlockSpec((TB, 2 * D), lambda b, s: (b, 0))),
        scratch_shapes=[pltpu.VMEM((TB, acc_sub, D), jnp.float32)],
        compiler_params=pltpu.CompilerParams(
            dimension_semantics=("parallel", "arbitrary"),
            vmem_limit_bytes=int(vmem_limit)),
    )(enc_text1, *weights)

    if Bp != B:
        logits, feat = logits[:B], feat[:B]
    return logits, feat


# ----------------------------------------------------------------------------
# Pure-JAX references for correctness checks
# ----------------------------------------------------------------------------
def _ref_contrastive(params, enc1, enc2):
    w1, b1 = params["to_text_latent1"]
    w2, b2 = params["to_text_latent2"]
    wd, bd = params["dense"]

    def head(enc):
        cls = enc.astype(jnp.float32).mean(axis=1)
        cls = jax.nn.relu(cls @ w1 + b1)
        cls = jax.nn.relu(cls @ w2 + b2)
        return cls @ wd + bd

    return head(enc1), head(enc2)


def _ref_classifier(params, enc):
    w1, b1 = params["to_text_latent1"]
    w2, b2 = params["to_text_latent2"]
    wf1, bf1 = params["fc1"]
    wf2, bf2 = params["fc2"]
    wf3, bf3 = params["fc3"]
    cls = enc.astype(jnp.float32).mean(axis=1)
    x1 = jax.nn.relu(jax.nn.relu(cls @ w1 + b1) @ w2 + b2)
    x2 = jax.nn.relu(jax.nn.relu(cls @ wf1 + bf1) @ wf2 + bf2)
    feat = jnp.concatenate([x1, x2], axis=-1)
    return feat @ wf3 + bf3, feat


# ----------------------------------------------------------------------------
if __name__ == "__main__":
    # Small shapes consistent with the module: batch=2, seq=8, hidden=32.
    B, S, D = 2, 8, 32
    NUM_CLASSES = 2

    key = jax.random.PRNGKey(0)
    k_params, k_e1, k_e2 = jax.random.split(key, 3)
    params = init_clip_params(k_params, D, NUM_CLASSES)

    # Synthetic "codeT5 last_hidden_state" encoder outputs.
    enc_text1 = jax.random.normal(k_e1, (B, S, D), jnp.float32)
    enc_text2 = jax.random.normal(k_e2, (B, S, D), jnp.float32)

    # Contrastive path (training_classifier=False)
    o1, o2 = clip_forward(params, enc_text1, enc_text2)
    jax.block_until_ready((o1, o2))
    r1, r2 = _ref_contrastive(params, enc_text1, enc_text2)
    assert jnp.allclose(o1, r1, atol=1e-4, rtol=1e-4)
    assert jnp.allclose(o2, r2, atol=1e-4, rtol=1e-4)

    # Classifier path (training_classifier=True)
    logits, feat = clip_forward_classifier(params, enc_text1)
    jax.block_until_ready((logits, feat))
    rl, rf = _ref_classifier(params, enc_text1)
    assert jnp.allclose(logits, rl, atol=1e-4, rtol=1e-4)
    assert jnp.allclose(feat, rf, atol=1e-4, rtol=1e-4)

    # Streaming / multi-tile exercise (aligned shapes; tiny tile cap forces the
    # pipelined seq reduction and the 2-way batch split onto the same code path
    # used for long sequences).
    B2, S2, D2 = 16, 256, 128
    k2p, k2a, k2b = jax.random.split(jax.random.PRNGKey(1), 3)
    params2 = init_clip_params(k2p, D2, NUM_CLASSES)
    e1 = jax.random.normal(k2a, (B2, S2, D2), jnp.float32)
    e2 = jax.random.normal(k2b, (B2, S2, D2), jnp.float32)

    p1, p2 = clip_forward(params2, e1, e2, max_enc_tile_bytes=128 * 1024)
    jax.block_until_ready((p1, p2))
    q1, q2 = _ref_contrastive(params2, e1, e2)
    assert jnp.allclose(p1, q1, atol=1e-4, rtol=1e-4)
    assert jnp.allclose(p2, q2, atol=1e-4, rtol=1e-4)

    pl2, pf2 = clip_forward_classifier(params2, e1, max_enc_tile_bytes=128 * 1024)
    jax.block_until_ready((pl2, pf2))
    ql2, qf2 = _ref_classifier(params2, e1)
    assert jnp.allclose(pl2, ql2, atol=1e-4, rtol=1e-4)
    assert jnp.allclose(pf2, qf2, atol=1e-4, rtol=1e-4)

    print("KERNEL_OK")
</pallas_src>

<mosaic_0001>
module attributes {stable_mosaic.version = 11 : i64} {
  func.func @_probe(%arg0: i32, %arg1: memref<8x128xf32, #tpu.memory_space<vmem>>, %arg2: memref<8x128xf32, #tpu.memory_space<vmem>>) attributes {dimension_semantics = [#tpu.dimension_semantics<arbitrary>], iteration_bounds = array<i64: 2>, scalar_prefetch = 0 : i64, scratch_operands = 0 : i64, tpu.core_type = #tpu.core_type<tc>, window_params = [{pipeline_mode = #tpu.pipeline_mode<synchronous>, transform_indices = @transform_0, window_bounds = array<i64: 8, 128>}, {pipeline_mode = #tpu.pipeline_mode<synchronous>, transform_indices = @transform_1, window_bounds = array<i64: 8, 128>}]} {
    %c0 = arith.constant 0 : index
    %c0_0 = arith.constant 0 : index
    %0 = vector.load %arg1[%c0, %c0_0] : memref<8x128xf32, #tpu.memory_space<vmem>>, vector<8x128xf32>
    %cst = arith.constant 1.000000e+00 : f32
    %1 = vector.broadcast %cst : f32 to vector<8x128xf32>
    %2 = arith.addf %0, %1 : vector<8x128xf32>
    %c0_1 = arith.constant 0 : index
    %c0_2 = arith.constant 0 : index
    %3 = vector.load %arg2[%c0_1, %c0_2] : memref<8x128xf32, #tpu.memory_space<vmem>>, vector<8x128xf32>
    tpu.vector_store %arg2[%c0_1, %c0_2], %2 {strides = array<i32>} : memref<8x128xf32, #tpu.memory_space<vmem>>, vector<8x128xf32>,
    return
  }
  func.func @transform_0(%arg0: i32) -> (i32, i32) {
    %c0_i32 = arith.constant 0 : i32
    %c0_i32_0 = arith.constant 0 : i32
    %c0_i32_1 = arith.constant 0 : i32
    return %c0_i32, %c0_i32_0 : i32, i32
  }
  func.func @transform_1(%arg0: i32) -> (i32, i32) {
    %c0_i32 = arith.constant 0 : i32
    %c0_i32_0 = arith.constant 0 : i32
    %c0_i32_1 = arith.constant 0 : i32
    return %c0_i32, %c0_i32_0 : i32, i32
  }
}

module attributes {stable_mosaic.version = 11 : i64} {
  func.func @_clip_contrastive_kernel(%arg0: i32, %arg1: i32, %arg2: memref<2x8x32xf32, #tpu.memory_space<vmem>>, %arg3: memref<2x8x32xf32, #tpu.memory_space<vmem>>, %arg4: memref<32x32xf32, #tpu.memory_space<vmem>>, %arg5: memref<1x32xf32, #tpu.memory_space<vmem>>, %arg6: memref<32x32xf32, #tpu.memory_space<vmem>>, %arg7: memref<1x32xf32, #tpu.memory_space<vmem>>, %arg8: memref<32x2xf32, #tpu.memory_space<vmem>>, %arg9: memref<1x2xf32, #tpu.memory_space<vmem>>, %arg10: memref<2x2xf32, #tpu.memory_space<vmem>>, %arg11: memref<2x2xf32, #tpu.memory_space<vmem>>, %arg12: memref<2x8x32xf32, #tpu.memory_space<vmem>>, %arg13: memref<2x8x32xf32, #tpu.memory_space<vmem>>) attributes {dimension_semantics = [#tpu.dimension_semantics<parallel>, #tpu.dimension_semantics<arbitrary>], iteration_bounds = array<i64: 1, 1>, scalar_prefetch = 0 : i64, scratch_operands = 2 : i64, tpu.core_type = #tpu.core_type<tc>, window_params = [{transform_indices = @transform_0, window_bounds = array<i64: 2, 8, 32>}, {transform_indices = @transform_1, window_bounds = array<i64: 2, 8, 32>}, {pipeline_mode = #tpu.pipeline_mode<synchronous>, transform_indices = @transform_2, window_bounds = array<i64: 32, 32>}, {pipeline_mode = #tpu.pipeline_mode<synchronous>, transform_indices = @transform_3, window_bounds = array<i64: 1, 32>}, {pipeline_mode = #tpu.pipeline_mode<synchronous>, transform_indices = @transform_4, window_bounds = array<i64: 32, 32>}, {pipeline_mode = #tpu.pipeline_mode<synchronous>, transform_indices = @transform_5, window_bounds = array<i64: 1, 32>}, {pipeline_mode = #tpu.pipeline_mode<synchronous>, transform_indices = @transform_6, window_bounds = array<i64: 32, 2>}, {pipeline_mode = #tpu.pipeline_mode<synchronous>, transform_indices = @transform_7, window_bounds = array<i64: 1, 2>}, {transform_indices = @transform_8, window_bounds = array<i64: 2, 2>}, {transform_indices = @transform_9, window_bounds = array<i64: 2, 2>}]} {
    %c0_i32 = arith.constant 0 : i32
    %0 = arith.cmpi eq, %arg1, %c0_i32 : i32
    %1 = arith.extui %0 : i1 to i32
    %c0_i32_0 = arith.constant 0 : i32
    %2 = arith.cmpi ne, %1, %c0_i32_0 : i32
    scf.if %2 {
      %cst_21 = arith.constant 0.000000e+00 : f32
      %18 = vector.broadcast %cst_21 : f32 to vector<2x8x32xf32>
      %c0_22 = arith.constant 0 : index
      %c0_23 = arith.constant 0 : index
      %c0_24 = arith.constant 0 : index
      %19 = vector.load %arg12[%c0_22, %c0_23, %c0_24] : memref<2x8x32xf32, #tpu.memory_space<vmem>>, vector<2x8x32xf32>
      tpu.vector_store %arg12[%c0_22, %c0_23, %c0_24], %18 {strides = array<i32>} : memref<2x8x32xf32, #tpu.memory_space<vmem>>, vector<2x8x32xf32>,
      %cst_25 = arith.constant 0.000000e+00 : f32
      %20 = vector.broadcast %cst_25 : f32 to vector<2x8x32xf32>
      %c0_26 = arith.constant 0 : index
      %c0_27 = arith.constant 0 : index
      %c0_28 = arith.constant 0 : index
      %21 = vector.load %arg13[%c0_26, %c0_27, %c0_28] : memref<2x8x32xf32, #tpu.memory_space<vmem>>, vector<2x8x32xf32>
      tpu.vector_store %arg13[%c0_26, %c0_27, %c0_28], %20 {strides = array<i32>} : memref<2x8x32xf32, #tpu.memory_space<vmem>>, vector<2x8x32xf32>,
    } else {
    }
    %c0 = arith.constant 0 : index
    %c0_1 = arith.constant 0 : index
    %c0_2 = arith.constant 0 : index
    %3 = vector.load %arg12[%c0, %c0_1, %c0_2] : memref<2x8x32xf32, #tpu.memory_space<vmem>>, vector<2x8x32xf32>
    %c0_3 = arith.constant 0 : index
    %c0_4 = arith.constant 0 : index
    %c0_5 = arith.constant 0 : index
    %4 = vector.load %arg2[%c0_3, %c0_4, %c0_5] : memref<2x8x32xf32, #tpu.memory_space<vmem>>, vector<2x8x32xf32>
    %5 = vector.shape_cast %4 : vector<2x8x32xf32> to vector<2x1x8x32xf32>
    %cst = arith.constant dense<0.000000e+00> : vector<2x8x32xf32>
    %6 = vector.multi_reduction <add>, %5, %cst [1] : vector<2x1x8x32xf32> to vector<2x8x32xf32>
    %7 = arith.addf %3, %6 : vector<2x8x32xf32>
    %c0_6 = arith.constant 0 : index
    %c0_7 = arith.constant 0 : index
    %c0_8 = arith.constant 0 : index
    %8 = vector.load %arg12[%c0_6, %c0_7, %c0_8] : memref<2x8x32xf32, #tpu.memory_space<vmem>>, vector<2x8x32xf32>
    tpu.vector_store %arg12[%c0_6, %c0_7, %c0_8], %7 {strides = array<i32>} : memref<2x8x32xf32, #tpu.memory_space<vmem>>, vector<2x8x32xf32>,
    %c0_9 = arith.constant 0 : index
    %c0_10 = arith.constant 0 : index
    %c0_11 = arith.constant 0 : index
    %9 = vector.load %arg13[%c0_9, %c0_10, %c0_11] : memref<2x8x32xf32, #tpu.memory_space<vmem>>, vector<2x8x32xf32>
    %c0_12 = arith.constant 0 : index
    %c0_13 = arith.constant 0 : index
    %c0_14 = arith.constant 0 : index
    %10 = vector.load %arg3[%c0_12, %c0_13, %c0_14] : memref<2x8x32xf32, #tpu.memory_space<vmem>>, vector<2x8x32xf32>
    %11 = vector.shape_cast %10 : vector<2x8x32xf32> to vector<2x1x8x32xf32>
    %cst_15 = arith.constant dense<0.000000e+00> : vector<2x8x32xf32>
    %12 = vector.multi_reduction <add>, %11, %cst_15 [1] : vector<2x1x8x32xf32> to vector<2x8x32xf32>
    %13 = arith.addf %9, %12 : vector<2x8x32xf32>
    %c0_16 = arith.constant 0 : index
    %c0_17 = arith.constant 0 : index
    %c0_18 = arith.constant 0 : index
    %14 = vector.load %arg13[%c0_16, %c0_17, %c0_18] : memref<2x8x32xf32, #tpu.memory_space<vmem>>, vector<2x8x32xf32>
    tpu.vector_store %arg13[%c0_16, %c0_17, %c0_18], %13 {strides = array<i32>} : memref<2x8x32xf32, #tpu.memory_space<vmem>>, vector<2x8x32xf32>,
    %c0_i32_19 = arith.constant 0 : i32
    %15 = arith.cmpi eq, %arg1, %c0_i32_19 : i32
    %16 = arith.extui %15 : i1 to i32
    %c0_i32_20 = arith.constant 0 : i32
    %17 = arith.cmpi ne, %16, %c0_i32_20 : i32
    scf.if %17 {
      %c0_21 = arith.constant 0 : index
      %c0_22 = arith.constant 0 : index
      %c0_23 = arith.constant 0 : index
      %18 = vector.load %arg12[%c0_21, %c0_22, %c0_23] : memref<2x8x32xf32, #tpu.memory_space<vmem>>, vector<2x8x32xf32>
      %cst_24 = arith.constant dense<0.000000e+00> : vector<2x32xf32>
      %19 = vector.multi_reduction <add>, %18, %cst_24 [1] : vector<2x8x32xf32> to vector<2x32xf32>
      %cst_25 = arith.constant 1.250000e-01 : f32
      %20 = vector.broadcast %cst_25 : f32 to vector<2x32xf32>
      %21 = arith.mulf %19, %20 : vector<2x32xf32>
      %c0_26 = arith.constant 0 : index
      %c0_27 = arith.constant 0 : index
      %22 = vector.load %arg4[%c0_26, %c0_27] : memref<32x32xf32, #tpu.memory_space<vmem>>, vector<32x32xf32>
      %cst_28 = arith.constant dense<0.000000e+00> : vector<2x32xf32>
      %23 = tpu.matmul %21, %22, %cst_28 {dimension_numbers = #tpu.dot_dimension_numbers<[1], [0], [0], [1], [0, 0, 1, 1], [], []>} : vector<2x32xf32>, vector<32x32xf32>, vector<2x32xf32> -> vector<2x32xf32>
      %c0_29 = arith.constant 0 : index
      %c0_30 = arith.constant 0 : index
      %24 = vector.load %arg5[%c0_29, %c0_30] : memref<1x32xf32, #tpu.memory_space<vmem>>, vector<1x32xf32>
      %25 = vector.broadcast %24 : vector<1x32xf32> to vector<2x32xf32>
      %26 = arith.addf %23, %25 : vector<2x32xf32>
      %cst_31 = arith.constant 0.000000e+00 : f32
      %27 = vector.broadcast %cst_31 : f32 to vector<2x32xf32>
      %28 = arith.maximumf %26, %27 : vector<2x32xf32>
      %c0_32 = arith.constant 0 : index
      %c0_33 = arith.constant 0 : index
      %29 = vector.load %arg6[%c0_32, %c0_33] : memref<32x32xf32, #tpu.memory_space<vmem>>, vector<32x32xf32>
      %cst_34 = arith.constant dense<0.000000e+00> : vector<2x32xf32>
      %30 = tpu.matmul %28, %29, %cst_34 {dimension_numbers = #tpu.dot_dimension_numbers<[1], [0], [0], [1], [0, 0, 1, 1], [], []>} : vector<2x32xf32>, vector<32x32xf32>, vector<2x32xf32> -> vector<2x32xf32>
      %c0_35 = arith.constant 0 : index
      %c0_36 = arith.constant 0 : index
      %31 = vector.load %arg7[%c0_35, %c0_36] : memref<1x32xf32, #tpu.memory_space<vmem>>, vector<1x32xf32>
      %32 = vector.broadcast %31 : vector<1x32xf32> to vector<2x32xf32>
      %33 = arith.addf %30, %32 : vector<2x32xf32>
      %cst_37 = arith.constant 0.000000e+00 : f32
      %34 = vector.broadcast %cst_37 : f32 to vector<2x32xf32>
      %35 = arith.maximumf %33, %34 : vector<2x32xf32>
      %c0_38 = arith.constant 0 : index
      %c0_39 = arith.constant 0 : index
      %36 = vector.load %arg8[%c0_38, %c0_39] : memref<32x2xf32, #tpu.memory_space<vmem>>, vector<32x2xf32>
      %cst_40 = arith.constant dense<0.000000e+00> : vector<2x2xf32>
      %37 = tpu.matmul %35, %36, %cst_40 {dimension_numbers = #tpu.dot_dimension_numbers<[1], [0], [0], [1], [0, 0, 1, 1], [], []>} : vector<2x32xf32>, vector<32x2xf32>, vector<2x2xf32> -> vector<2x2xf32>
      %c0_41 = arith.constant 0 : index
      %c0_42 = arith.constant 0 : index
      %38 = vector.load %arg9[%c0_41, %c0_42] : memref<1x2xf32, #tpu.memory_space<vmem>>, vector<1x2xf32>
      %39 = vector.broadcast %38 : vector<1x2xf32> to vector<2x2xf32>
      %40 = arith.addf %37, %39 : vector<2x2xf32>
      %c0_43 = arith.constant 0 : index
      %c0_44 = arith.constant 0 : index
      %41 = vector.load %arg10[%c0_43, %c0_44] : memref<2x2xf32, #tpu.memory_space<vmem>>, vector<2x2xf32>
      tpu.vector_store %arg10[%c0_43, %c0_44], %40 {strides = array<i32>} : memref<2x2xf32, #tpu.memory_space<vmem>>, vector<2x2xf32>,
      %c0_45 = arith.constant 0 : index
      %c0_46 = arith.constant 0 : index
      %c0_47 = arith.constant 0 : index
      %42 = vector.load %arg13[%c0_45, %c0_46, %c0_47] : memref<2x8x32xf32, #tpu.memory_space<vmem>>, vector<2x8x32xf32>
      %cst_48 = arith.constant dense<0.000000e+00> : vector<2x32xf32>
      %43 = vector.multi_reduction <add>, %42, %cst_48 [1] : vector<2x8x32xf32> to vector<2x32xf32>
      %cst_49 = arith.constant 1.250000e-01 : f32
      %44 = vector.broadcast %cst_49 : f32 to vector<2x32xf32>
      %45 = arith.mulf %43, %44 : vector<2x32xf32>
      %c0_50 = arith.constant 0 : index
      %c0_51 = arith.constant 0 : index
      %46 = vector.load %arg4[%c0_50, %c0_51] : memref<32x32xf32, #tpu.memory_space<vmem>>, vector<32x32xf32>
      %cst_52 = arith.constant dense<0.000000e+00> : vector<2x32xf32>
      %47 = tpu.matmul %45, %46, %cst_52 {dimension_numbers = #tpu.dot_dimension_numbers<[1], [0], [0], [1], [0, 0, 1, 1], [], []>} : vector<2x32xf32>, vector<32x32xf32>, vector<2x32xf32> -> vector<2x32xf32>
      %c0_53 = arith.constant 0 : index
      %c0_54 = arith.constant 0 : index
      %48 = vector.load %arg5[%c0_53, %c0_54] : memref<1x32xf32, #tpu.memory_space<vmem>>, vector<1x32xf32>
      %49 = vector.broadcast %48 : vector<1x32xf32> to vector<2x32xf32>
      %50 = arith.addf %47, %49 : vector<2x32xf32>
      %cst_55 = arith.constant 0.000000e+00 : f32
      %51 = vector.broadcast %cst_55 : f32 to vector<2x32xf32>
      %52 = arith.maximumf %50, %51 : vector<2x32xf32>
      %c0_56 = arith.constant 0 : index
      %c0_57 = arith.constant 0 : index
      %53 = vector.load %arg6[%c0_56, %c0_57] : memref<32x32xf32, #tpu.memory_space<vmem>>, vector<32x32xf32>
      %cst_58 = arith.constant dense<0.000000e+00> : vector<2x32xf32>
      %54 = tpu.matmul %52, %53, %cst_58 {dimension_numbers = #tpu.dot_dimension_numbers<[1], [0], [0], [1], [0, 0, 1, 1], [], []>} : vector<2x32xf32>, vector<32x32xf32>, vector<2x32xf32> -> vector<2x32xf32>
      %c0_59 = arith.constant 0 : index
      %c0_60 = arith.constant 0 : index
      %55 = vector.load %arg7[%c0_59, %c0_60] : memref<1x32xf32, #tpu.memory_space<vmem>>, vector<1x32xf32>
      %56 = vector.broadcast %55 : vector<1x32xf32> to vector<2x32xf32>
      %57 = arith.addf %54, %56 : vector<2x32xf32>
      %cst_61 = arith.constant 0.000000e+00 : f32
      %58 = vector.broadcast %cst_61 : f32 to vector<2x32xf32>
      %59 = arith.maximumf %57, %58 : vector<2x32xf32>
      %c0_62 = arith.constant 0 : index
      %c0_63 = arith.constant 0 : index
      %60 = vector.load %arg8[%c0_62, %c0_63] : memref<32x2xf32, #tpu.memory_space<vmem>>, vector<32x2xf32>
      %cst_64 = arith.constant dense<0.000000e+00> : vector<2x2xf32>
      %61 = tpu.matmul %59, %60, %cst_64 {dimension_numbers = #tpu.dot_dimension_numbers<[1], [0], [0], [1], [0, 0, 1, 1], [], []>} : vector<2x32xf32>, vector<32x2xf32>, vector<2x2xf32> -> vector<2x2xf32>
      %c0_65 = arith.constant 0 : index
      %c0_66 = arith.constant 0 : index
      %62 = vector.load %arg9[%c0_65, %c0_66] : memref<1x2xf32, #tpu.memory_space<vmem>>, vector<1x2xf32>
      %63 = vector.broadcast %62 : vector<1x2xf32> to vector<2x2xf32>
      %64 = arith.addf %61, %63 : vector<2x2xf32>
      %c0_67 = arith.constant 0 : index
      %c0_68 = arith.constant 0 : index
      %65 = vector.load %arg11[%c0_67, %c0_68] : memref<2x2xf32, #tpu.memory_space<vmem>>, vector<2x2xf32>
      tpu.vector_store %arg11[%c0_67, %c0_68], %64 {strides = array<i32>} : memref<2x2xf32, #tpu.memory_space<vmem>>, vector<2x2xf32>,
    } else {
    }
    return
  }
  func.func @transform_0(%arg0: i32, %arg1: i32) -> (i32, i32, i32) {
    %c0_i32 = arith.constant 0 : i32
    %c0_i32_0 = arith.constant 0 : i32
    return %arg0, %arg1, %c0_i32 : i32, i32, i32
  }
  func.func @transform_1(%arg0: i32, %arg1: i32) -> (i32, i32, i32) {
    %c0_i32 = arith.constant 0 : i32
    %c0_i32_0 = arith.constant 0 : i32
    return %arg0, %arg1, %c0_i32 : i32, i32, i32
  }
  func.func @transform_2(%arg0: i32, %arg1: i32) -> (i32, i32) {
    %c0_i32 = arith.constant 0 : i32
    %c0_i32_0 = arith.constant 0 : i32
    %c0_i32_1 = arith.constant 0 : i32
    return %c0_i32, %c0_i32_0 : i32, i32
  }
  func.func @transform_3(%arg0: i32, %arg1: i32) -> (i32, i32) {
    %c0_i32 = arith.constant 0 : i32
    %c0_i32_0 = arith.constant 0 : i32
    %c0_i32_1 = arith.constant 0 : i32
    return %c0_i32, %c0_i32_0 : i32, i32
  }
  func.func @transform_4(%arg0: i32, %arg1: i32) -> (i32, i32) {
    %c0_i32 = arith.constant 0 : i32
    %c0_i32_0 = arith.constant 0 : i32
    %c0_i32_1 = arith.constant 0 : i32
    return %c0_i32, %c0_i32_0 : i32, i32
  }
  func.func @transform_5(%arg0: i32, %arg1: i32) -> (i32, i32) {
    %c0_i32 = arith.constant 0 : i32
    %c0_i32_0 = arith.constant 0 : i32
    %c0_i32_1 = arith.constant 0 : i32
    return %c0_i32, %c0_i32_0 : i32, i32
  }
  func.func @transform_6(%arg0: i32, %arg1: i32) -> (i32, i32) {
    %c0_i32 = arith.constant 0 : i32
    %c0_i32_0 = arith.constant 0 : i32
    %c0_i32_1 = arith.constant 0 : i32
    return %c0_i32, %c0_i32_0 : i32, i32
  }
  func.func @transform_7(%arg0: i32, %arg1: i32) -> (i32, i32) {
    %c0_i32 = arith.constant 0 : i32
    %c0_i32_0 = arith.constant 0 : i32
    %c0_i32_1 = arith.constant 0 : i32
    return %c0_i32, %c0_i32_0 : i32, i32
  }
  func.func @transform_8(%arg0: i32, %arg1: i32) -> (i32, i32) {
    %c0_i32 = arith.constant 0 : i32
    %c0_i32_0 = arith.constant 0 : i32
    return %arg0, %c0_i32 : i32, i32
  }
  func.func @transform_9(%arg0: i32, %arg1: i32) -> (i32, i32) {
    %c0_i32 = arith.constant 0 : i32
    %c0_i32_0 = arith.constant 0 : i32
    return %arg0, %c0_i32 : i32, i32
  }
}

</mosaic_0001>

<llo_original>
// kernel: tpu_custom_call.1
$region0: #{tpu_custom_call.1}
  #allocation0 [shape = 'u32[]', space=smem, size = 0x4, offset = 0x4, fixed_abs, tag = 'smem constant byte address 0x4 - core index']
  #allocation1 [shape = 'u32[72,128]{1,0:T(1,128)}', space=vmem, size = 0x9000, scoped, tag = 'internal scratch']
  %s0 = inlined_call_operand.hbm [shape: f32[8,128], index: 0, kind: input, shape index: {}]
  %s1 = inlined_call_operand.hbm [shape: f32[8,128], index: 1, kind: output, shape index: {}]
  %s2 = sld [smem:[#allocation0]]
  $region41: #{tpu_custom_call.1} parent=0
    _
  %s4 = ssub.s32 1, %s2
  %s5 = scalar_select 0, %s4, %s2
  $region1: #{tpu_custom_call.1} parent=0
    #allocation2 [shape = 'u8[4096]{0}', space=vmem, size = 0x1000, scoped, tag = 'input window, operand 0, single buffered']
    #allocation3 [shape = 's32[2]{0}', space=sflag, size = 0x8, scoped, tag = 'scoped memory for tpu_custom_call.1']
    #allocation4 [shape = 's32[2]{0}', space=sflag, size = 0x8, scoped, tag = 'scoped memory for tpu_custom_call.1']
    #allocation5 [shape = 'u8[4096]{0}', space=vmem, size = 0x1000, scoped, tag = 'output window, operand 0, single buffered']
    %6 = vsyncpa [#allocation3], 0
    %7 = vsyncpa [#allocation4], 0
    loop: start=0, step=1, limit=4
    $region2: #{tpu_custom_call.1} parent=1 // loop_pre_header
      _
    $region3: #{tpu_custom_call.1} parent=1 // loop_header
      %s9 = sphi 0, %s13
      %p10 = scmp.ge.s32.totalorder %s9, 4
      %s17 = sphi 0, %s17
      %s19 = sphi 0, %s17
      %s20 = sphi 0, %s19
      %s34 = sphi 0, %s20
      %s38 = sphi 0, %s38
      %s40 = sphi 0, %s38
      %s41 = sphi 0, %s40
      %s55 = sphi 0, %s41
    $region4: #{tpu_custom_call.1} parent=1 // loop_header_branch
      %12 = sbr.rel (%p10) target = $region8
    $region5: #{tpu_custom_call.1} parent=1 // loop_body
      %s14 = ssub.s32 %s9, 1
      %s15 = ssub.s32 %s9, 2
      %s16 = sadd.s32 %s9, 1
      %s18 = sadd.s32 %s17, 1
      %p21 = scmp.eq.s32.totalorder %s9, 1
      %p22 = scmp.ne.s32.totalorder %s17, %s19
      %p23 = scmp.eq.s32.totalorder %s9, 0
      %p24 = por %p22, %p23
      %p25 = scmp.ne.s32.totalorder %s17, %s19
      %p26 = scmp.eq.s32.totalorder %s14, 1
      %p27 = por %p25, %p26
      %p28 = scmp.ne.s32.totalorder %s19, %s20
      %p29 = scmp.eq.s32.totalorder %s14, 0
      %p30 = por %p28, %p29
      %p31 = scmp.ne.s32.totalorder %s19, %s20
      %p32 = scmp.eq.s32.totalorder %s15, 1
      %p33 = por %p31, %p32
      %p35 = scmp.ne.s32.totalorder %s20, %s34
      %p36 = scmp.eq.s32.totalorder %s15, 0
      %p37 = por %p35, %p36
      %s39 = sadd.s32 %s38, 1
      %p42 = scmp.eq.s32.totalorder %s9, 1
      %p43 = scmp.ne.s32.totalorder %s38, %s40
      %p44 = scmp.eq.s32.totalorder %s9, 0
      %p45 = por %p43, %p44
      %p46 = scmp.ne.s32.totalorder %s38, %s40
      %p47 = scmp.eq.s32.totalorder %s14, 1
      %p48 = por %p46, %p47
      %p49 = scmp.ne.s32.totalorder %s40, %s41
      %p50 = scmp.eq.s32.totalorder %s14, 0
      %p51 = por %p49, %p50
      %p52 = scmp.ne.s32.totalorder %s40, %s41
      %p53 = scmp.eq.s32.totalorder %s15, 1
      %p54 = por %p52, %p53
      %p56 = scmp.ne.s32.totalorder %s41, %s55
      %p57 = scmp.eq.s32.totalorder %s15, 0
      %p58 = por %p56, %p57
      %p59 = scmp.le.s32.totalorder 1, %s9
      %p60 = scmp.lt.s32.totalorder %s9, 3
      %p61 = pnand %p59, %p60
      %p62 = pneg %p61
      // Predicated region
      $region9: #{tpu_custom_call.1} parent=5 // pred_check
        _
      $region10: #{tpu_custom_call.1} parent=5 // pred_check_branch
        %64 = sbr.rel (%p61) target = $region12
      $region11: #{tpu_custom_call.1} parent=5 // pred_region
        %s65 = ssub.s32 %s9, 1
        // Predicated region
        $region13: #{tpu_custom_call.1} parent=11 // pred_check
          %p66 = pneg %p30
        $region14: #{tpu_custom_call.1} parent=11 // pred_check_branch
          %68 = sbr.rel (%p66) target = $region16
        $region15: #{tpu_custom_call.1} parent=11 // pred_region
          %70 = vsyncadd [#allocation3], 0
          %s72 = sshll.u32 %s0, 4
          %s73 = int_to_ptr.hbm [resolvable:$true] %s72
          %s74 = sshll.u32 [#allocation2], 4
          %s75 = int_to_ptr.vmem [resolvable:$true] %s74
          %77 = dma.hbm_to_vmem [thread:$0]  %s73, 128, %s75, [#allocation3]
        $region16: #{tpu_custom_call.1} parent=11 // pred_fallthru
          _
      $region12: #{tpu_custom_call.1} parent=5 // pred_fallthru
        _
      %p78 = scmp.lt.s32.totalorder %s9, 2
      // Predicated region
      $region17: #{tpu_custom_call.1} parent=5 // pred_check
        %p79 = pneg %p78
      $region18: #{tpu_custom_call.1} parent=5 // pred_check_branch
        %81 = sbr.rel (%p79) target = $region20
      $region19: #{tpu_custom_call.1} parent=5 // pred_region
        _
      $region20: #{tpu_custom_call.1} parent=5 // pred_fallthru
        _
      %p82 = scmp.le.s32.totalorder 1, %s9
      %p83 = scmp.lt.s32.totalorder %s9, 3
      %p84 = pnand %p82, %p83
      %p85 = pneg %p84
      // Predicated region
      $region21: #{tpu_custom_call.1} parent=5 // pred_check
        _
      $region22: #{tpu_custom_call.1} parent=5 // pred_check_branch
        %87 = sbr.rel (%p84) target = $region24
      $region23: #{tpu_custom_call.1} parent=5 // pred_region
        %s88 = ssub.s32 %s9, 1
        // Predicated region
        $region25: #{tpu_custom_call.1} parent=23 // pred_check
          %p89 = pneg %p30
        $region26: #{tpu_custom_call.1} parent=23 // pred_check_branch
          %91 = sbr.rel (%p89) target = $region28
        $region27: #{tpu_custom_call.1} parent=23 // pred_region
          %93 = dma.done [#allocation3], 128
        $region28: #{tpu_custom_call.1} parent=23 // pred_fallthru
          _
        %p94 = pneg %p30
        %p95 = pneg %p27
        %p96 = pneg %p51
        %p97 = pneg %p48
        %v98 = vld [vmem:[#allocation2] sm:$0xff]
        %v99 = vadd.f32 %v98, 1.0
        %100 = vst [vmem:[#allocation5] sm:$0xff] %v99
        // Predicated region
        $region29: #{tpu_custom_call.1} parent=23 // pred_check
          %p101 = pneg %p48
        $region30: #{tpu_custom_call.1} parent=23 // pred_check_branch
          %103 = sbr.rel (%p101) target = $region32
        $region31: #{tpu_custom_call.1} parent=23 // pred_region
          %105 = vsyncadd [#allocation4], 0
          %s107 = sshll.u32 [#allocation5], 4
          %s108 = int_to_ptr.vmem [resolvable:$true] %s107
          %s109 = sshll.u32 %s1, 4
          %s110 = int_to_ptr.hbm [resolvable:$true] %s109
          %112 = dma.vmem_to_hbm [thread:$0]  %s108, 128, %s110, [#allocation4]
        $region32: #{tpu_custom_call.1} parent=23 // pred_fallthru
          _
        // Predicated region
        $region33: #{tpu_custom_call.1} parent=23 // pred_check
          %p113 = pneg %p48
        $region34: #{tpu_custom_call.1} parent=23 // pred_check_branch
          %115 = sbr.rel (%p113) target = $region36
        $region35: #{tpu_custom_call.1} parent=23 // pred_region
          %117 = dma.done [#allocation4], 128
        $region36: #{tpu_custom_call.1} parent=23 // pred_fallthru
          _
      $region24: #{tpu_custom_call.1} parent=5 // pred_fallthru
        _
      %p118 = scmp.le.s32.totalorder 2, %s9
      // Predicated region
      $region37: #{tpu_custom_call.1} parent=5 // pred_check
        %p119 = pneg %p118
      $region38: #{tpu_custom_call.1} parent=5 // pred_check_branch
        %121 = sbr.rel (%p119) target = $region40
      $region39: #{tpu_custom_call.1} parent=5 // pred_region
        %s122 = ssub.s32 %s9, 2
      $region40: #{tpu_custom_call.1} parent=5 // pred_fallthru
        _
    $region6: #{tpu_custom_call.1} parent=1 // loop_footer
      %s13 = sadd.s32 1, %s9
    $region7: #{tpu_custom_call.1} parent=1 // loop_footer_branch
      %8 = sbr.rel target = $region3
    $region8: #{tpu_custom_call.1} parent=1 // loop_exit
      _
    %123 = vsyncpa [#allocation3], 1
    %s124 = scalar_lea.sflag [#allocation3], 1
    %125 = vsyncpa %s124, 1
    %126 = vsyncpa [#allocation4], 1
    %s127 = scalar_lea.sflag [#allocation4], 1
    %128 = vsyncpa %s127, 1

// kernel: tpu_custom_call.1
$region0: #{tpu_custom_call.1}
  #allocation0 [shape = 'u32[]', space=smem, size = 0x4, offset = 0x4, fixed_abs, tag = 'smem constant byte address 0x4 - core index']
  #allocation1 [shape = 'u32[72,128]{1,0:T(1,128)}', space=vmem, size = 0x9000, scoped, tag = 'internal scratch']
  #allocation2 [shape = 'f32[2,8,32]{2,1,0:T(8,128)}', space=vmem, size = 0x2000, scoped, tag = 'scratch operand']
  #allocation3 [shape = 'f32[2,8,32]{2,1,0:T(8,128)}', space=vmem, size = 0x2000, scoped, tag = 'scratch operand']
  %s0 = inlined_call_operand.hbm [shape: f32[2,8,32], index: 0, kind: input, shape index: {}]
  %s1 = inlined_call_operand.hbm [shape: f32[2,8,32], index: 1, kind: input, shape index: {}]
  %s2 = inlined_call_operand.vmem [shape: f32[32,32], index: 2, kind: input, shape index: {}]
  %s3 = inlined_call_operand.vmem [shape: f32[1,32], index: 3, kind: input, shape index: {}]
  %s4 = inlined_call_operand.hbm [shape: f32[32,32], index: 4, kind: input, shape index: {}]
  %s5 = inlined_call_operand.vmem [shape: f32[1,32], index: 5, kind: input, shape index: {}]
  %s6 = inlined_call_operand.vmem [shape: f32[32,2], index: 6, kind: input, shape index: {}]
  %s7 = inlined_call_operand.vmem [shape: f32[1,2], index: 7, kind: input, shape index: {}]
  %s8 = inlined_call_operand.hbm [shape: f32[2,2], index: 8, kind: output, shape index: {0}]
  %s9 = inlined_call_operand.hbm [shape: f32[2,2], index: 9, kind: output, shape index: {1}]
  %10 = xla_tuple %s8, %s9
  %s11 = sld [smem:[#allocation0]]
  $region70: #{tpu_custom_call.1} parent=0
    _
  %s13 = ssub.s32 1, %s11
  %s14 = scalar_select 0, %s13, %s11
  $region1: #{tpu_custom_call.1} parent=0
    #allocation4 [shape = 'u8[8192]{0}', space=vmem, size = 0x2000, scoped, tag = 'input window, operand 0, single buffered']
    #allocation5 [shape = 's32[1]{0}', space=sflag, size = 0x4, scoped, tag = 'scoped memory for tpu_custom_call.1']
    #allocation6 [shape = 's32[1]{0}', space=sflag, size = 0x4, scoped, tag = 'scoped memory for tpu_custom_call.1']
    #allocation7 [shape = 'u8[8192]{0}', space=vmem, size = 0x2000, scoped, tag = 'input window, operand 1, single buffered']
    #allocation8 [shape = 's32[1]{0}', space=sflag, size = 0x4, scoped, tag = 'scoped memory for tpu_custom_call.1']
    #allocation9 [shape = 'u8[16384]{0}', space=vmem, size = 0x4000, scoped, tag = 'input window, operand 4, single buffered']
    #allocation10 [shape = 'u8[1024]{0}', space=vmem, size = 0x400, scoped, tag = 'output window, operand 0, single buffered']
    #allocation11 [shape = 'u8[1024]{0}', space=vmem, size = 0x400, scoped, tag = 'output window, operand 1, single buffered']
    #allocation12 [shape = 's32[1]{0}', space=sflag, size = 0x4, scoped, tag = 'scoped memory for tpu_custom_call.1']
    %15 = vsyncpa [#allocation5], 0
    %16 = vsyncpa [#allocation8], 0
    %17 = vsyncpa [#allocation6], 0
    %18 = vsyncpa [#allocation12], 0
    // Predicated region
    $region2: #{tpu_custom_call.1} parent=1 // pred_check
      _
    $region3: #{tpu_custom_call.1} parent=1 // pred_check_branch
      %20 = sbr.rel (0) target = $region5
    $region4: #{tpu_custom_call.1} parent=1 // pred_region
      %22 = vsyncadd [#allocation5], 0
      %s23 = sshll.u32 %s0, 4
      %s24 = int_to_ptr.hbm [resolvable:$true] %s23
      %s25 = sshll.u32 [#allocation4], 4
      %s26 = int_to_ptr.vmem [resolvable:$true] %s25
      %31 = dma.hbm_to_vmem [thread:$0]  %s24, 256, %s26, [#allocation5], 128, 128, 8
    $region5: #{tpu_custom_call.1} parent=1 // pred_fallthru
      _
    // Predicated region
    $region6: #{tpu_custom_call.1} parent=1 // pred_check
      _
    $region7: #{tpu_custom_call.1} parent=1 // pred_check_branch
      %33 = sbr.rel (0) target = $region9
    $region8: #{tpu_custom_call.1} parent=1 // pred_region
      %35 = vsyncadd [#allocation8], 0
      %s36 = sshll.u32 %s1, 4
      %s37 = int_to_ptr.hbm [resolvable:$true] %s36
      %s38 = sshll.u32 [#allocation7], 4
      %s39 = int_to_ptr.vmem [resolvable:$true] %s38
      %44 = dma.hbm_to_vmem [thread:$0]  %s37, 256, %s39, [#allocation8], 128, 128, 8
    $region9: #{tpu_custom_call.1} parent=1 // pred_fallthru
      _
    // Predicated region
    $region10: #{tpu_custom_call.1} parent=1 // pred_check
      _
    $region11: #{tpu_custom_call.1} parent=1 // pred_check_branch
      %46 = sbr.rel (0) target = $region13
    $region12: #{tpu_custom_call.1} parent=1 // pred_region
      _
    $region13: #{tpu_custom_call.1} parent=1 // pred_fallthru
      _
    // Predicated region
    $region14: #{tpu_custom_call.1} parent=1 // pred_check
      _
    $region15: #{tpu_custom_call.1} parent=1 // pred_check_branch
      %48 = sbr.rel (0) target = $region17
    $region16: #{tpu_custom_call.1} parent=1 // pred_region
      _
    $region17: #{tpu_custom_call.1} parent=1 // pred_fallthru
      _
    // Predicated region
    $region18: #{tpu_custom_call.1} parent=1 // pred_check
      _
    $region19: #{tpu_custom_call.1} parent=1 // pred_check_branch
      %50 = sbr.rel (0) target = $region21
    $region20: #{tpu_custom_call.1} parent=1 // pred_region
      %52 = vsyncadd [#allocation8], 0
      %s53 = sshll.u32 %s4, 4
      %s54 = int_to_ptr.hbm [resolvable:$true] %s53
      %s55 = sshll.u32 [#allocation9], 4
      %s56 = int_to_ptr.vmem [resolvable:$true] %s55
      %61 = dma.hbm_to_vmem [thread:$0]  %s54, 512, %s56, [#allocation8], 128, 128, 8
    $region21: #{tpu_custom_call.1} parent=1 // pred_fallthru
      _
    // Predicated region
    $region22: #{tpu_custom_call.1} parent=1 // pred_check
      _
    $region23: #{tpu_custom_call.1} parent=1 // pred_check_branch
      %63 = sbr.rel (0) target = $region25
    $region24: #{tpu_custom_call.1} parent=1 // pred_region
      _
    $region25: #{tpu_custom_call.1} parent=1 // pred_fallthru
      _
    // Predicated region
    $region26: #{tpu_custom_call.1} parent=1 // pred_check
      _
    $region27: #{tpu_custom_call.1} parent=1 // pred_check_branch
      %65 = sbr.rel (0) target = $region29
    $region28: #{tpu_custom_call.1} parent=1 // pred_region
      _
    $region29: #{tpu_custom_call.1} parent=1 // pred_fallthru
      _
    // Predicated region
    $region30: #{tpu_custom_call.1} parent=1 // pred_check
      _
    $region31: #{tpu_custom_call.1} parent=1 // pred_check_branch
      %67 = sbr.rel (0) target = $region33
    $region32: #{tpu_custom_call.1} parent=1 // pred_region
      _
    $region33: #{tpu_custom_call.1} parent=1 // pred_fallthru
      _
    // Predicated region
    $region34: #{tpu_custom_call.1} parent=1 // pred_check
      _
    $region35: #{tpu_custom_call.1} parent=1 // pred_check_branch
      %69 = sbr.rel (0) target = $region37
    $region36: #{tpu_custom_call.1} parent=1 // pred_region
      %71 = dma.done [#allocation5], 256
    $region37: #{tpu_custom_call.1} parent=1 // pred_fallthru
      _
    // Predicated region
    $region38: #{tpu_custom_call.1} parent=1 // pred_check
      _
    $region39: #{tpu_custom_call.1} parent=1 // pred_check_branch
      %73 = sbr.rel (0) target = $region41
    $region40: #{tpu_custom_call.1} parent=1 // pred_region
      %75 = dma.done [#allocation8], 256
    $region41: #{tpu_custom_call.1} parent=1 // pred_fallthru
      _
    // Predicated region
    $region42: #{tpu_custom_call.1} parent=1 // pred_check
      _
    $region43: #{tpu_custom_call.1} parent=1 // pred_check_branch
      %77 = sbr.rel (0) target = $region45
    $region44: #{tpu_custom_call.1} parent=1 // pred_region
      %79 = dma.done [#allocation8], 512
    $region45: #{tpu_custom_call.1} parent=1 // pred_fallthru
      _
    %p80 = scmp.eq.s32.totalorder 0, 0
    // Predicated region
    $region46: #{tpu_custom_call.1} parent=1 // pred_check
      %p81 = pneg %p80
    $region47: #{tpu_custom_call.1} parent=1 // pred_check_branch
      %83 = sbr.rel (%p81) target = $region49
    $region48: #{tpu_custom_call.1} parent=1 // pred_region
      %vm84 = vcmask 261120
      %85 = vst.msk [vmem:[#allocation2] sm:$0xff] %vm84, 0.0
      %86 = vst.msk [vmem:[#allocation2 + $0x8] sm:$0xff] %vm84, 0.0
      %87 = vst.msk [vmem:[#allocation3] sm:$0xff] %vm84, 0.0
      %88 = vst.msk [vmem:[#allocation3 + $0x8] sm:$0xff] %vm84, 0.0
    $region49: #{tpu_custom_call.1} parent=1 // pred_fallthru
      _
    %v89 = vld [vmem:[#allocation2] sm:$0xff]
    %v90 = vld [vmem:[#allocation2 + $0x8] sm:$0xff]
    %v91 = vld [vmem:[#allocation4] sm:$0xff]
    %v92 = vld [vmem:[#allocation4 + $0x8] sm:$0xff]
    %v93 = vadd.f32 %v91, 0.0
    %v94 = vadd.f32 %v92, 0.0
    %v95 = vadd.f32 %v89, %v93
    %v96 = vadd.f32 %v90, %v94
    %vm97 = vcmask 261120
    %98 = vst.msk [vmem:[#allocation2] sm:$0xff] %vm97, %v95
    %99 = vst.msk [vmem:[#allocation2 + $0x8] sm:$0xff] %vm97, %v96
    %v100 = vld [vmem:[#allocation3] sm:$0xff]
    %v101 = vld [vmem:[#allocation3 + $0x8] sm:$0xff]
    %v102 = vld [vmem:[#allocation7] sm:$0xff]
    %v103 = vld [vmem:[#allocation7 + $0x8] sm:$0xff]
    %v104 = vadd.f32 %v102, 0.0
    %v105 = vadd.f32 %v103, 0.0
    %v106 = vadd.f32 %v100, %v104
    %v107 = vadd.f32 %v101, %v105
    %108 = vst.msk [vmem:[#allocation3] sm:$0xff] %vm97, %v106
    %109 = vst.msk [vmem:[#allocation3 + $0x8] sm:$0xff] %vm97, %v107
    // Predicated region
    $region50: #{tpu_custom_call.1} parent=1 // pred_check
      %p110 = pneg %p80
    $region51: #{tpu_custom_call.1} parent=1 // pred_check_branch
      %112 = sbr.rel (%p110) target = $region53
    $region52: #{tpu_custom_call.1} parent=1 // pred_region
      %v113 = vld [vmem:[#allocation2] sm:$0xff]
      %v114 = vld [vmem:[#allocation2 + $0x8] sm:$0xff]
      %v115 = vsel %vm97, %v113, 0.0
      %v116 = vrot.slane %v115, 4
      %v117 = vadd.f32 %v115, %v116
      %v118 = vrot.slane %v117, 2
      %v119 = vadd.f32 %v117, %v118
      %v120 = vrot.slane %v119, 1
      %v121 = vadd.f32 %v119, %v120
      %v122 = vsel %vm97, %v114, 0.0
      %v123 = vrot.slane %v122, 4
      %v124 = vadd.f32 %v122, %v123
      %v125 = vrot.slane %v124, 2
      %v126 = vadd.f32 %v124, %v125
      %v127 = vrot.slane %v126, 1
      %v128 = vadd.f32 %v126, %v127
      %v129 = vmul.f32 %v121, 0.125
      %v130 = vmul.f32 %v128, 0.125
      %v131 = vld [vmem:[%s2] sm:$0xff]
      %v132 = vld [vmem:[%s2 + $0x8] sm:$0xff]
      %v133 = vld [vmem:[%s2 + $0x10] sm:$0xff]
      %v134 = vld [vmem:[%s2 + $0x18] sm:$0xff]
      %v135 = vld [vmem:[%s3] sm:$0x1]
      %v137 = vperm.slane %v135, 0
      %vm141 = vcmask 1041409
      %v142 = vsel %vm141, %v130, %v129
      %v143 = vsel %vm97, %v142, 0
      %145 = vmatpush.msra.mxu0 0.0
      %146 = vmatpush.msra.mxu0 0.0
      %147 = vmatpush.msra.mxu0 0.0
      %148 = vmatpush.msra.mxu0 0.0
      %149 = vmatpush.msra.mxu0 0.0
      %150 = vmatpush.msra.mxu0 0.0
      %151 = vmatpush.msra.mxu0 0.0
      %152 = vmatpush.msra.mxu0 0.0
      %153 = vmatpush.msra.mxu0 0.0
      %154 = vmatpush.msra.mxu0 0.0
      %155 = vmatpush.msra.mxu0 0.0
      %156 = vmatpush.msra.mxu0 0.0
      %157 = vmatpush.msra.mxu0 %v134
      %158 = vmatpush.msra.mxu0 %v133
      %159 = vmatpush.msra.mxu0 %v132
      %160 = vmatpush.msra.mxu0 %v131
      %161 = vmatmul.f32.gmra.mxu0 %v143
      %v162 = vpop.f32.mrf.mxu0
      %v163 = vadd.f32 %v137, %v162
      %164 = vdwg.mxu0
      %v165 = vmax.f32 %v163, 0.0
      %v166 = vld [vmem:[#allocation9] sm:$0xff]
      %v167 = vld [vmem:[#allocation9 + $0x8] sm:$0xff]
      %v168 = vld [vmem:[#allocation9 + $0x10] sm:$0xff]
      %v169 = vld [vmem:[#allocation9 + $0x18] sm:$0xff]
      %v170 = vld [vmem:[%s5] sm:$0x1]
      %v172 = vperm.slane %v170, 0
      %v175 = vsel %vm97, %v165, 0
      %177 = vmatpush.msra.mxu0 0.0
      %178 = vmatpush.msra.mxu0 0.0
      %179 = vmatpush.msra.mxu0 0.0
      %180 = vmatpush.msra.mxu0 0.0
      %181 = vmatpush.msra.mxu0 0.0
      %182 = vmatpush.msra.mxu0 0.0
      %183 = vmatpush.msra.mxu0 0.0
      %184 = vmatpush.msra.mxu0 0.0
      %185 = vmatpush.msra.mxu0 0.0
      %186 = vmatpush.msra.mxu0 0.0
      %187 = vmatpush.msra.mxu0 0.0
      %188 = vmatpush.msra.mxu0 0.0
      %189 = vmatpush.msra.mxu0 %v169
      %190 = vmatpush.msra.mxu0 %v168
      %191 = vmatpush.msra.mxu0 %v167
      %192 = vmatpush.msra.mxu0 %v166
      %193 = vmatmul.f32.gmra.mxu0 %v175
      %v194 = vpop.f32.mrf.mxu0
      %v195 = vadd.f32 %v172, %v194
      %196 = vdwg.mxu0
      %v197 = vmax.f32 %v195, 0.0
      %v198 = vld [vmem:[%s6] sm:$0xff]
      %v199 = vld [vmem:[%s6 + $0x8] sm:$0xff]
      %v200 = vld [vmem:[%s6 + $0x10] sm:$0xff]
      %v201 = vld [vmem:[%s6 + $0x18] sm:$0xff]
      %v202 = vld [vmem:[%s7] sm:$0x1]
      %v204 = vperm.slane %v202, 0
      %v207 = vsel %vm97, %v197, 0
      %209 = vmatpush.msra.mxu0 0.0
      %210 = vmatpush.msra.mxu0 0.0
      %211 = vmatpush.msra.mxu0 0.0
      %212 = vmatpush.msra.mxu0 0.0
      %213 = vmatpush.msra.mxu0 0.0
      %214 = vmatpush.msra.mxu0 0.0
      %215 = vmatpush.msra.mxu0 0.0
      %216 = vmatpush.msra.mxu0 0.0
      %217 = vmatpush.msra.mxu0 0.0
      %218 = vmatpush.msra.mxu0 0.0
      %219 = vmatpush.msra.mxu0 0.0
      %220 = vmatpush.msra.mxu0 0.0
      %221 = vmatpush.msra.mxu0 %v201
      %222 = vmatpush.msra.mxu0 %v200
      %223 = vmatpush.msra.mxu0 %v199
      %224 = vmatpush.msra.mxu0 %v198
      %225 = vmatmul.f32.gmra.mxu0 %v207
      %v226 = vpop.f32.mrf.mxu0
      %v227 = vadd.f32 %v204, %v226
      %228 = vdwg.mxu0
      %vm229 = vcmask 9216
      %230 = vst.msk [vmem:[#allocation10] sm:$0x3] %vm229, %v227
      %v231 = vld [vmem:[#allocation3] sm:$0xff]
      %v232 = vld [vmem:[#allocation3 + $0x8] sm:$0xff]
      %v233 = vsel %vm97, %v231, 0.0
      %v234 = vrot.slane %v233, 4
      %v235 = vadd.f32 %v233, %v234
      %v236 = vrot.slane %v235, 2
      %v237 = vadd.f32 %v235, %v236
      %v238 = vrot.slane %v237, 1
      %v239 = vadd.f32 %v237, %v238
      %v240 = vsel %vm97, %v232, 0.0
      %v241 = vrot.slane %v240, 4
      %v242 = vadd.f32 %v240, %v241
      %v243 = vrot.slane %v242, 2
      %v244 = vadd.f32 %v242, %v243
      %v245 = vrot.slane %v244, 1
      %v246 = vadd.f32 %v244, %v245
      %v247 = vmul.f32 %v239, 0.125
      %v248 = vmul.f32 %v246, 0.125
      %v249 = vld [vmem:[%s2] sm:$0xff]
      %v250 = vld [vmem:[%s2 + $0x8] sm:$0xff]
      %v251 = vld [vmem:[%s2 + $0x10] sm:$0xff]
      %v252 = vld [vmem:[%s2 + $0x18] sm:$0xff]
      %v253 = vld [vmem:[%s3] sm:$0x1]
      %v255 = vperm.slane %v253, 0
      %v259 = vsel %vm141, %v248, %v247
      %v260 = vsel %vm97, %v259, 0
      %262 = vmatpush.msra.mxu0 0.0
      %263 = vmatpush.msra.mxu0 0.0
      %264 = vmatpush.msra.mxu0 0.0
      %265 = vmatpush.msra.mxu0 0.0
      %266 = vmatpush.msra.mxu0 0.0
      %267 = vmatpush.msra.mxu0 0.0
      %268 = vmatpush.msra.mxu0 0.0
      %269 = vmatpush.msra.mxu0 0.0
      %270 = vmatpush.msra.mxu0 0.0
      %271 = vmatpush.msra.mxu0 0.0
      %272 = vmatpush.msra.mxu0 0.0
      %273 = vmatpush.msra.mxu0 0.0
      %274 = vmatpush.msra.mxu0 %v252
      %275 = vmatpush.msra.mxu0 %v251
      %276 = vmatpush.msra.mxu0 %v250
      %277 = vmatpush.msra.mxu0 %v249
      %278 = vmatmul.f32.gmra.mxu0 %v260
      %v279 = vpop.f32.mrf.mxu0
      %v280 = vadd.f32 %v255, %v279
      %281 = vdwg.mxu0
      %v282 = vmax.f32 %v280, 0.0
      %v283 = vld [vmem:[#allocation9] sm:$0xff]
      %v284 = vld [vmem:[#allocation9 + $0x8] sm:$0xff]
      %v285 = vld [vmem:[#allocation9 + $0x10] sm:$0xff]
      %v286 = vld [vmem:[#allocation9 + $0x18] sm:$0xff]
      %v287 = vld [vmem:[%s5] sm:$0x1]
      %v289 = vperm.slane %v287, 0
      %v292 = vsel %vm97, %v282, 0
      %294 = vmatpush.msra.mxu0 0.0
      %295 = vmatpush.msra.mxu0 0.0
      %296 = vmatpush.msra.mxu0 0.0
      %297 = vmatpush.msra.mxu0 0.0
      %298 = vmatpush.msra.mxu0 0.0
      %299 = vmatpush.msra.mxu0 0.0
      %300 = vmatpush.msra.mxu0 0.0
      %301 = vmatpush.msra.mxu0 0.0
      %302 = vmatpush.msra.mxu0 0.0
      %303 = vmatpush.msra.mxu0 0.0
      %304 = vmatpush.msra.mxu0 0.0
      %305 = vmatpush.msra.mxu0 0.0
      %306 = vmatpush.msra.mxu0 %v286
      %307 = vmatpush.msra.mxu0 %v285
      %308 = vmatpush.msra.mxu0 %v284
      %309 = vmatpush.msra.mxu0 %v283
      %310 = vmatmul.f32.gmra.mxu0 %v292
      %v311 = vpop.f32.mrf.mxu0
      %v312 = vadd.f32 %v289, %v311
      %313 = vdwg.mxu0
      %v314 = vmax.f32 %v312, 0.0
      %v315 = vld [vmem:[%s6] sm:$0xff]
      %v316 = vld [vmem:[%s6 + $0x8] sm:$0xff]
      %v317 = vld [vmem:[%s6 + $0x10] sm:$0xff]
      %v318 = vld [vmem:[%s6 + $0x18] sm:$0xff]
      %v319 = vld [vmem:[%s7] sm:$0x1]
      %v321 = vperm.slane %v319, 0
      %v324 = vsel %vm97, %v314, 0
      %326 = vmatpush.msra.mxu0 0.0
      %327 = vmatpush.msra.mxu0 0.0
      %328 = vmatpush.msra.mxu0 0.0
      %329 = vmatpush.msra.mxu0 0.0
      %330 = vmatpush.msra.mxu0 0.0
      %331 = vmatpush.msra.mxu0 0.0
      %332 = vmatpush.msra.mxu0 0.0
      %333 = vmatpush.msra.mxu0 0.0
      %334 = vmatpush.msra.mxu0 0.0
      %335 = vmatpush.msra.mxu0 0.0
      %336 = vmatpush.msra.mxu0 0.0
      %337 = vmatpush.msra.mxu0 0.0
      %338 = vmatpush.msra.mxu0 %v318
      %339 = vmatpush.msra.mxu0 %v317
      %340 = vmatpush.msra.mxu0 %v316
      %341 = vmatpush.msra.mxu0 %v315
      %342 = vmatmul.f32.gmra.mxu0 %v324
      %v343 = vpop.f32.mrf.mxu0
      %v344 = vadd.f32 %v321, %v343
      %345 = vdwg.mxu0
      %346 = vst.msk [vmem:[#allocation11] sm:$0x3] %vm229, %v344
    $region53: #{tpu_custom_call.1} parent=1 // pred_fallthru
      _
    // Predicated region
    $region54: #{tpu_custom_call.1} parent=1 // pred_check
      _
    $region55: #{tpu_custom_call.1} parent=1 // pred_check_branch
      %348 = sbr.rel (0) target = $region57
    $region56: #{tpu_custom_call.1} parent=1 // pred_region
      %350 = vsyncadd [#allocation6], 0
      %s352 = sshll.u32 [#allocation10], 4
      %s353 = int_to_ptr.vmem [resolvable:$true] %s352
      %s354 = sshll.u32 %s8, 4
      %s355 = int_to_ptr.hbm [resolvable:$true] %s354
      %357 = dma.vmem_to_hbm [thread:$0]  %s353, 32, %s355, [#allocation6]
    $region57: #{tpu_custom_call.1} parent=1 // pred_fallthru
      _
    // Predicated region
    $region58: #{tpu_custom_call.1} parent=1 // pred_check
      _
    $region59: #{tpu_custom_call.1} parent=1 // pred_check_branch
      %359 = sbr.rel (0) target = $region61
    $region60: #{tpu_custom_call.1} parent=1 // pred_region
      %361 = vsyncadd [#allocation12], 0
      %s363 = sshll.u32 [#allocation11], 4
      %s364 = int_to_ptr.vmem [resolvable:$true] %s363
      %s365 = sshll.u32 %s9, 4
      %s366 = int_to_ptr.hbm [resolvable:$true] %s365
      %368 = dma.vmem_to_hbm [thread:$0]  %s364, 32, %s366, [#allocation12]
    $region61: #{tpu_custom_call.1} parent=1 // pred_fallthru
      _
    // Predicated region
    $region62: #{tpu_custom_call.1} parent=1 // pred_check
      _
    $region63: #{tpu_custom_call.1} parent=1 // pred_check_branch
      %370 = sbr.rel (0) target = $region65
    $region64: #{tpu_custom_call.1} parent=1 // pred_region
      %372 = dma.done [#allocation6], 32
    $region65: #{tpu_custom_call.1} parent=1 // pred_fallthru
      _
    // Predicated region
    $region66: #{tpu_custom_call.1} parent=1 // pred_check
      _
    $region67: #{tpu_custom_call.1} parent=1 // pred_check_branch
      %374 = sbr.rel (0) target = $region69
    $region68: #{tpu_custom_call.1} parent=1 // pred_region
      %376 = dma.done [#allocation12], 32
    $region69: #{tpu_custom_call.1} parent=1 // pred_fallthru
      _
    %377 = vsyncpa [#allocation5], 1
    %378 = vsyncpa [#allocation8], 1
    %379 = vsyncpa [#allocation6], 1
    %380 = vsyncpa [#allocation12], 1

</llo_original>
